<compile_context>
chip_gen: v7x
topology: tpu7x:2x2x1
jax: 0.10.0
libtpu: 0.0.40
codegen_flags: <defaults>
</compile_context>

<pallas_src>
import math

import jax
import jax.numpy as jnp
from jax.experimental import pallas as pl
from jax.experimental.pallas import tpu as pltpu


def _round_up(x, m):
    return ((x + m - 1) // m) * m


def _nconv_kernel(x_ref, at_ref, o_ref):
    """x_ref: (B, W, L);  at_ref: (W, V) [= A^T, resident];  o_ref: (B*L, V).

    One fused, lane-dense MXU matmul per grid step:
        x2[b*L + l, w] = x[b, w, l]        (XLU minor-dims transpose + leading merge)
        y = x2 @ A^T                       ((B*L, W) @ (W, V) -> (B*L, V), f32 acc)
        o[b*L + l, v] = y[b*L + l, v]      (unmasked, lane-dense stores: minor dim = V)
    """
    B, W, L = x_ref.shape
    x_blk = x_ref[...]                                  # (B, W, L)
    # (B, W, L) -> (B, L, W): batched last-two-dims transpose (XLU slot, hidden
    # under the block DMA); -> (B*L, W): leading-dim merge.
    x2 = jnp.swapaxes(x_blk, 1, 2).reshape(B * L, W)
    a_t = at_ref[...]                                   # (W, V), stays resident

    if x2.dtype == jnp.bfloat16:
        prec = None                          # bf16 operands + f32 accumulation: MXU fast path
    else:
        prec = jax.lax.Precision.HIGHEST     # exact f32 (tight match vs. the f32 reference)

    y = jnp.dot(x2, a_t, preferred_element_type=jnp.float32, precision=prec)
    o_ref[...] = y.astype(o_ref.dtype)


def _pick_block(nc, L, slab_bytes, budget, min_steps=4):
    """Choose B (slabs per grid step) and a possibly padded NC.

    Constraints:
      * double-buffered in+out blocks fit `budget` (slab_bytes already includes
        the (8,128) VMEM tile padding),
      * (B*L) % 8 == 0 so the 2-D (B*L, V) output block is a legal sublane size,
      * prefer >= min_steps grid steps (pipeline overlap; 2 v7x TensorCores).
    Returns (B, nc_padded) with nc_padded % B == 0.
    """
    align = 8 // math.gcd(L, 8)                       # smallest B with (B*L) % 8 == 0
    b_budget = max(1, budget // (2 * slab_bytes))
    b_budget = max(align, (b_budget // align) * align)

    # 1) aligned divisors of nc that fit the budget (no padding needed).
    divs = [d for d in range(align, nc + 1, align) if nc % d == 0 and d <= b_budget]
    if nc <= b_budget and nc % align != 0:
        divs.append(nc)                                # B == NC is always a legal block
    if divs:
        stepped = [d for d in divs if nc // d >= min_steps]
        return (max(stepped) if stepped else max(divs)), nc

    # 2) awkward NC: pad it to a multiple of an aligned, budget-fitting B.
    b = min(b_budget, max(align, _round_up(-(-nc // min_steps), align)))
    b = max(align, (b // align) * align)
    return b, _round_up(nc, b)


def nconv_pallas(x, A, *, use_bf16_matmul=False):
    """x: (N, C, W, L); A: (V, W) -> (N, C, V, L), matching
    torch.einsum('ncwl,vw->ncvl', (x, A))."""
    N, C, W, L = x.shape
    V, W2 = A.shape
    assert W2 == W, (A.shape, x.shape)
    out_dtype = x.dtype

    # Operand prep (free or tiny): merge the adjacent (N, C) dims of x (no data
    # movement) and pre-transpose / pre-cast the tiny A in the wrapper so the
    # kernel's resident tile is already in matmul layout.
    NC = N * C
    x_flat = x.reshape(NC, W, L)
    a_t = jnp.swapaxes(A, 0, 1)                        # (W, V)
    if use_bf16_matmul:
        # Cast in the wrapper so the pallas_call DMAs bf16 (halves x's HBM bytes).
        x_flat = x_flat.astype(jnp.bfloat16)
        a_t = a_t.astype(jnp.bfloat16)

    in_itemsize = x_flat.dtype.itemsize
    out_itemsize = jnp.dtype(out_dtype).itemsize

    # Real VMEM footprint of the block buffers, including (8,128) tile padding:
    #   input block  (B, W, L): last two dims pad to (round_up(W,8), round_up(L,128))
    #   output block (B*L, V):  per slab L rows of round_up(V,128) lanes (dense in L*V)
    in_slab = _round_up(W, 8) * _round_up(L, 128) * in_itemsize
    out_slab = L * _round_up(V, 128) * out_itemsize

    try:
        vmem_cap = int(pltpu.get_tpu_info().vmem_capacity_bytes)
    except Exception:
        vmem_cap = 64 << 20                            # conservative (v7x-sized) fallback
    block_budget = max(4 << 20, min(vmem_cap // 4, 32 << 20))

    B, NC_pad = _pick_block(NC, L, in_slab + out_slab, block_budget, min_steps=4)
    if NC_pad != NC:
        # Awkward NC: pad a few zero slabs instead of degenerating to B == 1.
        x_flat = jnp.pad(x_flat, ((0, NC_pad - NC), (0, 0), (0, 0)))
    grid = (NC_pad // B,)

    # Explicit VMEM limit: double-buffered blocks + resident A^T + headroom for
    # the transpose / matmul intermediates Mosaic materializes for the block.
    interm = 3 * B * L * max(_round_up(W, 128), _round_up(V, 128)) * 4
    a_bytes = 2 * _round_up(W, 8) * _round_up(V, 128) * in_itemsize
    vmem_need = 2 * B * (in_slab + out_slab) + a_bytes + interm
    vmem_limit = int(min(max(vmem_need + (8 << 20), 32 << 20), (vmem_cap * 3) // 4))

    cost = pl.CostEstimate(
        flops=int(2 * NC * V * W * L),
        transcendentals=0,
        bytes_accessed=int(x_flat.size * in_itemsize + a_t.size * in_itemsize
                           + NC * V * L * out_itemsize),
    )

    out2 = pl.pallas_call(
        _nconv_kernel,
        out_shape=jax.ShapeDtypeStruct((NC_pad * L, V), out_dtype),
        grid=grid,
        in_specs=[
            pl.BlockSpec((B, W, L), lambda i: (i, 0, 0)),   # contiguous HBM block of B slabs
            pl.BlockSpec((W, V), lambda i: (0, 0)),         # A^T, resident across the grid
        ],
        out_specs=pl.BlockSpec((B * L, V), lambda i: (i, 0)),  # lane-dense: minor dim = V
        compiler_params=pltpu.CompilerParams(
            dimension_semantics=("parallel",),
            vmem_limit_bytes=vmem_limit,
        ),
        cost_estimate=cost,
    )(x_flat, a_t)

    # (NC_pad*L, V) -> (N, C, V, L): drop padded slabs, split adjacent dims
    # (free), then one last-two-dims transpose — the wrapper-side half of the
    # lane-dense-store trade (kernel writes V-minor, consumer wants L-minor).
    out = out2[: NC * L].reshape(N, C, L, V)
    return jnp.swapaxes(out, -1, -2)


def nconv_reference(x, A):
    """Pure-JAX reference mirroring torch.einsum('ncwl,vw->ncvl', (x, A))."""
    return jnp.einsum('ncwl,vw->ncvl', x, A,
                      precision=jax.lax.Precision.HIGHEST)


if __name__ == "__main__":
    # Small, forward-consistent shapes: x is (N, C, W, L); A is (V, W) with
    # V == W (square node adjacency, as in the MTGNN graphs).
    N, C, W, L = 2, 4, 16, 8
    V = 16

    key = jax.random.PRNGKey(0)
    kx, ka = jax.random.split(key)
    x = jax.random.normal(kx, (N, C, W, L), jnp.float32)
    A = jax.random.normal(ka, (V, W), jnp.float32)

    ref = jax.block_until_ready(nconv_reference(x, A))

    # f32 path: exact-precision matmul, tight tolerance.
    out = jax.block_until_ready(nconv_pallas(x, A))
    assert out.shape == (N, C, V, L), out.shape
    err = float(jnp.max(jnp.abs(out - ref)))
    assert jnp.allclose(out, ref, rtol=1e-5, atol=1e-5), err

    # bf16-operand path (production default, esp. v5e): bf16 DMAs + bf16 MXU
    # operands, f32 accumulation; tolerance reflects bf16 rounding over K=16.
    out_bf16 = jax.block_until_ready(nconv_pallas(x, A, use_bf16_matmul=True))
    err_bf16 = float(jnp.max(jnp.abs(out_bf16 - ref)))
    assert jnp.allclose(out_bf16, ref, rtol=5e-2, atol=5e-2), err_bf16

    print("KERNEL_OK")
</pallas_src>

<mosaic_0001>
module attributes {stable_mosaic.version = 11 : i64} {
  func.func @_nconv_kernel(%arg0: i32, %arg1: memref<2x16x8xf32, #tpu.memory_space<vmem>>, %arg2: memref<16x16xf32, #tpu.memory_space<vmem>>, %arg3: memref<16x16xf32, #tpu.memory_space<vmem>>) attributes {dimension_semantics = [#tpu.dimension_semantics<parallel>], iteration_bounds = array<i64: 4>, scalar_prefetch = 0 : i64, scratch_operands = 0 : i64, tpu.core_type = #tpu.core_type<tc>, window_params = [{transform_indices = @transform_0, window_bounds = array<i64: 2, 16, 8>}, {pipeline_mode = #tpu.pipeline_mode<synchronous>, transform_indices = @transform_1, window_bounds = array<i64: 16, 16>}, {transform_indices = @transform_2, window_bounds = array<i64: 16, 16>}]} {
    %c0 = arith.constant 0 : index
    %c0_0 = arith.constant 0 : index
    %c0_1 = arith.constant 0 : index
    %0 = vector.load %arg1[%c0, %c0_0, %c0_1] : memref<2x16x8xf32, #tpu.memory_space<vmem>>, vector<2x16x8xf32>
    %1 = tpu.transpose %0, [0, 2, 1] : vector<2x16x8xf32> -> vector<2x8x16xf32>
    %2 = vector.shape_cast %1 : vector<2x8x16xf32> to vector<16x16xf32>
    %c0_2 = arith.constant 0 : index
    %c0_3 = arith.constant 0 : index
    %3 = vector.load %arg2[%c0_2, %c0_3] : memref<16x16xf32, #tpu.memory_space<vmem>>, vector<16x16xf32>
    %cst = arith.constant dense<0.000000e+00> : vector<16x16xf32>
    %4 = tpu.matmul %2, %3, %cst {dimension_numbers = #tpu.dot_dimension_numbers<[1], [0], [0], [1], [0, 0, 1, 1], [], []>, precision = #tpu.contract_precision<fp32>} : vector<16x16xf32>, vector<16x16xf32>, vector<16x16xf32> -> vector<16x16xf32>
    %c0_4 = arith.constant 0 : index
    %c0_5 = arith.constant 0 : index
    %5 = vector.load %arg3[%c0_4, %c0_5] : memref<16x16xf32, #tpu.memory_space<vmem>>, vector<16x16xf32>
    tpu.vector_store %arg3[%c0_4, %c0_5], %4 {strides = array<i32>} : memref<16x16xf32, #tpu.memory_space<vmem>>, vector<16x16xf32>,
    return
  }
  func.func @transform_0(%arg0: i32) -> (i32, i32, i32) {
    %c0_i32 = arith.constant 0 : i32
    %c0_i32_0 = arith.constant 0 : i32
    %c0_i32_1 = arith.constant 0 : i32
    return %arg0, %c0_i32, %c0_i32_0 : i32, i32, i32
  }
  func.func @transform_1(%arg0: i32) -> (i32, i32) {
    %c0_i32 = arith.constant 0 : i32
    %c0_i32_0 = arith.constant 0 : i32
    %c0_i32_1 = arith.constant 0 : i32
    return %c0_i32, %c0_i32_0 : i32, i32
  }
  func.func @transform_2(%arg0: i32) -> (i32, i32) {
    %c0_i32 = arith.constant 0 : i32
    %c0_i32_0 = arith.constant 0 : i32
    return %arg0, %c0_i32 : i32, i32
  }
}

</mosaic_0001>

<llo_original>
// kernel: tpu_custom_call.1
$region0: #{tpu_custom_call.1}
  #allocation0 [shape = 'u32[]', space=smem, size = 0x4, offset = 0x4, fixed_abs, tag = 'smem constant byte address 0x4 - core index']
  #allocation1 [shape = 'u32[144,128]{1,0:T(1,128)}', space=vmem, size = 0x12000, scoped, tag = 'internal scratch']
  %s0 = inlined_call_operand.vmem [shape: f32[8,16,8], index: 0, kind: input, shape index: {}]
  %s1 = inlined_call_operand.vmem [shape: f32[16,16], index: 1, kind: input, shape index: {}]
  %s2 = inlined_call_operand.vmem [shape: f32[64,16], index: 2, kind: output, shape index: {}]
  %s3 = sld [smem:[#allocation0]]
  $region41: #{tpu_custom_call.1} parent=0
    _
  %s5 = ssub.s32 1, %s3
  %s6 = scalar_select 0, %s5, %s3
  loop: start=0, step=1, limit=6
  $region2: #{tpu_custom_call.1} parent=0 // loop_pre_header
    _
  $region3: #{tpu_custom_call.1} parent=0 // loop_header
    %s8 = sphi 0, %s12
    %p9 = scmp.ge.s32.totalorder %s8, 6
    %s18 = sphi 0, %s20
    %s21 = sphi 0, %s18
    %s22 = sphi 0, %s21
    %s38 = sphi 0, %s22
    %s42 = sphi 0, %s42
    %s44 = sphi 0, %s42
    %s45 = sphi 0, %s44
    %s59 = sphi 0, %s45
    %s65 = sphi 0, %s67
    %s68 = sphi 0, %s65
    %s69 = sphi 0, %s68
    %s85 = sphi 0, %s69
  $region4: #{tpu_custom_call.1} parent=0 // loop_header_branch
    %11 = sbr.rel (%p9) target = $region8
  $region5: #{tpu_custom_call.1} parent=0 // loop_body
    %s13 = ssub.s32 %s8, 1
    %s14 = ssub.s32 %s8, 2
    %s15 = sadd.s32 %s8, 1
    %s16 = ssub.s32 %s8, %s15
    %p17 = scmp.eq.s32.totalorder %s16, 0
    %s19 = sadd.s32 %s18, 1
    %s20 = scalar_select %p17, %s18, %s19
    %p23 = pneg %p17
    %p24 = scmp.eq.s32.totalorder %s8, 3
    %p25 = por %p23, %p24
    %p26 = scmp.ne.s32.totalorder %s18, %s21
    %p27 = scmp.eq.s32.totalorder %s8, 0
    %p28 = por %p26, %p27
    %p29 = scmp.ne.s32.totalorder %s18, %s21
    %p30 = scmp.eq.s32.totalorder %s13, 3
    %p31 = por %p29, %p30
    %p32 = scmp.ne.s32.totalorder %s21, %s22
    %p33 = scmp.eq.s32.totalorder %s13, 0
    %p34 = por %p32, %p33
    %p35 = scmp.ne.s32.totalorder %s21, %s22
    %p36 = scmp.eq.s32.totalorder %s14, 3
    %p37 = por %p35, %p36
    %p39 = scmp.ne.s32.totalorder %s22, %s38
    %p40 = scmp.eq.s32.totalorder %s14, 0
    %p41 = por %p39, %p40
    %s43 = sadd.s32 %s42, 1
    %p46 = scmp.eq.s32.totalorder %s8, 3
    %p47 = scmp.ne.s32.totalorder %s42, %s44
    %p48 = scmp.eq.s32.totalorder %s8, 0
    %p49 = por %p47, %p48
    %p50 = scmp.ne.s32.totalorder %s42, %s44
    %p51 = scmp.eq.s32.totalorder %s13, 3
    %p52 = por %p50, %p51
    %p53 = scmp.ne.s32.totalorder %s44, %s45
    %p54 = scmp.eq.s32.totalorder %s13, 0
    %p55 = por %p53, %p54
    %p56 = scmp.ne.s32.totalorder %s44, %s45
    %p57 = scmp.eq.s32.totalorder %s14, 3
    %p58 = por %p56, %p57
    %p60 = scmp.ne.s32.totalorder %s45, %s59
    %p61 = scmp.eq.s32.totalorder %s14, 0
    %p62 = por %p60, %p61
    %s63 = ssub.s32 %s8, %s15
    %p64 = scmp.eq.s32.totalorder %s63, 0
    %s66 = sadd.s32 %s65, 1
    %s67 = scalar_select %p64, %s65, %s66
    %p70 = pneg %p64
    %p71 = scmp.eq.s32.totalorder %s8, 3
    %p72 = por %p70, %p71
    %p73 = scmp.ne.s32.totalorder %s65, %s68
    %p74 = scmp.eq.s32.totalorder %s8, 0
    %p75 = por %p73, %p74
    %p76 = scmp.ne.s32.totalorder %s65, %s68
    %p77 = scmp.eq.s32.totalorder %s13, 3
    %p78 = por %p76, %p77
    %p79 = scmp.ne.s32.totalorder %s68, %s69
    %p80 = scmp.eq.s32.totalorder %s13, 0
    %p81 = por %p79, %p80
    %p82 = scmp.ne.s32.totalorder %s68, %s69
    %p83 = scmp.eq.s32.totalorder %s14, 3
    %p84 = por %p82, %p83
    %p86 = scmp.ne.s32.totalorder %s69, %s85
    %p87 = scmp.eq.s32.totalorder %s14, 0
    %p88 = por %p86, %p87
    %p89 = scmp.le.s32.totalorder 1, %s8
    %p90 = scmp.lt.s32.totalorder %s8, 5
    %p91 = pnand %p89, %p90
    %p92 = pneg %p91
    // Predicated region
    $region9: #{tpu_custom_call.1} parent=5 // pred_check
      _
    $region10: #{tpu_custom_call.1} parent=5 // pred_check_branch
      %94 = sbr.rel (%p91) target = $region12
    $region11: #{tpu_custom_call.1} parent=5 // pred_region
      %s95 = ssub.s32 %s8, 1
      // Predicated region
      $region13: #{tpu_custom_call.1} parent=11 // pred_check
        %p96 = pneg %p55
      $region14: #{tpu_custom_call.1} parent=11 // pred_check_branch
        %98 = sbr.rel (%p96) target = $region16
      $region15: #{tpu_custom_call.1} parent=11 // pred_region
        _
      $region16: #{tpu_custom_call.1} parent=11 // pred_fallthru
        _
    $region12: #{tpu_custom_call.1} parent=5 // pred_fallthru
      _
    %p99 = scmp.lt.s32.totalorder %s8, 4
    // Predicated region
    $region17: #{tpu_custom_call.1} parent=5 // pred_check
      %p100 = pneg %p99
    $region18: #{tpu_custom_call.1} parent=5 // pred_check_branch
      %102 = sbr.rel (%p100) target = $region20
    $region19: #{tpu_custom_call.1} parent=5 // pred_region
      // Predicated region
      $region21: #{tpu_custom_call.1} parent=19 // pred_check
        %p103 = pneg %p28
      $region22: #{tpu_custom_call.1} parent=19 // pred_check_branch
        %105 = sbr.rel (%p103) target = $region24
      $region23: #{tpu_custom_call.1} parent=19 // pred_region
        %s106 = smul.u32 2, %s8
        %p107 = scmp.lt.s32.totalorder %s106, 7
        %s108 = scalar_select %p107, %s106, 7
        %s109 = smul.addr %s108, 2
        %s110 = smul.addr %s109, 8
        %s111 = scalar_lea.vmem %s0, %s110
        %s112 = smul.u32 2, %s8
      $region24: #{tpu_custom_call.1} parent=19 // pred_fallthru
        _
    $region20: #{tpu_custom_call.1} parent=5 // pred_fallthru
      _
    %p113 = scmp.le.s32.totalorder 1, %s8
    %p114 = scmp.lt.s32.totalorder %s8, 5
    %p115 = pnand %p113, %p114
    %p116 = pneg %p115
    // Predicated region
    $region25: #{tpu_custom_call.1} parent=5 // pred_check
      _
    $region26: #{tpu_custom_call.1} parent=5 // pred_check_branch
      %118 = sbr.rel (%p115) target = $region28
    $region27: #{tpu_custom_call.1} parent=5 // pred_region
      %s119 = ssub.s32 %s8, 1
      %s120 = smul.u32 2, %s13
      %p121 = scmp.lt.s32.totalorder %s120, 7
      %s122 = scalar_select %p121, %s120, 7
      %s123 = smul.addr %s122, 2
      %s124 = smul.addr %s123, 8
      %s125 = scalar_lea.vmem %s0, %s124
      %p126 = pneg %p34
      %p127 = pneg %p31
      %p128 = pneg %p55
      %p129 = pneg %p52
      %p130 = pneg %p81
      %p131 = pneg %p78
      %s132 = smul.u32 2, %s13
      %p133 = scmp.lt.s32.totalorder %s132, 7
      %s134 = scalar_select %p133, %s132, 7
      %s135 = smul.addr %s134, 8
      %s136 = scalar_lea.vmem %s2, %s135
      %s137 = smul.u32 2, %s13
      %p138 = scmp.lt.s32.totalorder %s137, 7
      %s139 = scalar_select %p138, %s137, 7
      %s140 = smul.addr %s139, 2
      %s141 = smul.addr %s140, 8
      %s142 = scalar_lea.vmem %s0, %s141
      %s143 = smul.u32 2, %s13
      %s144 = smul.u32 2, %s13
      %p145 = scmp.lt.s32.totalorder %s144, 7
      %s146 = scalar_select %p145, %s144, 7
      %s147 = smul.addr %s146, 8
      %s148 = scalar_lea.vmem %s2, %s147
      %s149 = smul.u32 2, %s13
      %v150 = vld [vmem:[%s142] sm:$0xff]
      %v151 = vld [vmem:[%s142 + $0x8] sm:$0xff]
      %v152 = vld [vmem:[%s142 + $0x10] sm:$0xff]
      %v153 = vld [vmem:[%s142 + $0x18] sm:$0xff]
      %154 = vxpose.xlu0.b32.start [1/16] %v150, 128
      %155 = vxpose.xlu0.b32.cont [2/16] %v151, 128
      %156 = vxpose.xlu0.b32.cont [3/16] 0.0, 128
      %157 = vxpose.xlu0.b32.cont [4/16] 0.0, 128
      %158 = vxpose.xlu0.b32.cont [5/16] 0.0, 128
      %159 = vxpose.xlu0.b32.cont [6/16] 0.0, 128
      %160 = vxpose.xlu0.b32.cont [7/16] 0.0, 128
      %161 = vxpose.xlu0.b32.cont [8/16] 0.0, 128
      %162 = vxpose.xlu0.b32.cont [9/16] 0.0, 128
      %163 = vxpose.xlu0.b32.cont [10/16] 0.0, 128
      %164 = vxpose.xlu0.b32.cont [11/16] 0.0, 128
      %165 = vxpose.xlu0.b32.cont [12/16] 0.0, 128
      %166 = vxpose.xlu0.b32.cont [13/16] 0.0, 128
      %167 = vxpose.xlu0.b32.cont [14/16] 0.0, 128
      %168 = vxpose.xlu0.b32.cont [15/16] 0.0, 128
      %169 = vxpose.xlu0.b32.end [16/16] 0.0, 128
      %v170 = vpop.trf.xlu0
      %v171 = vpop.trf.xlu0
      %v172 = vpop.trf.xlu0
      %v173 = vpop.trf.xlu0
      %v174 = vpop.trf.xlu0
      %v175 = vpop.trf.xlu0
      %v176 = vpop.trf.xlu0
      %v177 = vpop.trf.xlu0
      %v178 = vpop.trf.xlu0
      %v179 = vpop.trf.xlu0
      %v180 = vpop.trf.xlu0
      %v181 = vpop.trf.xlu0
      %v182 = vpop.trf.xlu0
      %v183 = vpop.trf.xlu0
      %v184 = vpop.trf.xlu0
      %v185 = vpop.trf.xlu0
      %186 = vxpose.xlu0.b32.start [1/16] %v152, 128
      %187 = vxpose.xlu0.b32.cont [2/16] %v153, 128
      %188 = vxpose.xlu0.b32.cont [3/16] 0.0, 128
      %189 = vxpose.xlu0.b32.cont [4/16] 0.0, 128
      %190 = vxpose.xlu0.b32.cont [5/16] 0.0, 128
      %191 = vxpose.xlu0.b32.cont [6/16] 0.0, 128
      %192 = vxpose.xlu0.b32.cont [7/16] 0.0, 128
      %193 = vxpose.xlu0.b32.cont [8/16] 0.0, 128
      %194 = vxpose.xlu0.b32.cont [9/16] 0.0, 128
      %195 = vxpose.xlu0.b32.cont [10/16] 0.0, 128
      %196 = vxpose.xlu0.b32.cont [11/16] 0.0, 128
      %197 = vxpose.xlu0.b32.cont [12/16] 0.0, 128
      %198 = vxpose.xlu0.b32.cont [13/16] 0.0, 128
      %199 = vxpose.xlu0.b32.cont [14/16] 0.0, 128
      %200 = vxpose.xlu0.b32.cont [15/16] 0.0, 128
      %201 = vxpose.xlu0.b32.end [16/16] 0.0, 128
      %v202 = vpop.trf.xlu0
      %v203 = vpop.trf.xlu0
      %v204 = vpop.trf.xlu0
      %v205 = vpop.trf.xlu0
      %v206 = vpop.trf.xlu0
      %v207 = vpop.trf.xlu0
      %v208 = vpop.trf.xlu0
      %v209 = vpop.trf.xlu0
      %v210 = vpop.trf.xlu0
      %v211 = vpop.trf.xlu0
      %v212 = vpop.trf.xlu0
      %v213 = vpop.trf.xlu0
      %v214 = vpop.trf.xlu0
      %v215 = vpop.trf.xlu0
      %v216 = vpop.trf.xlu0
      %v217 = vpop.trf.xlu0
      %v218 = vld [vmem:[%s1] sm:$0xff]
      %v219 = vld [vmem:[%s1 + $0x8] sm:$0xff]
      %vm220 = vcmask 130048
      %v222 = vsel %vm220, %v170, 0
      %v225 = vsel %vm220, %v202, 0
      %227 = vmatprep.subr.mxu0 0.0
      %v228 = vand.u32 %v218, 4294901760
      %229 = vmatpush1.msra.mxu0 %v228
      %230 = vmatprep.subr.mxu0 0.0
      %v231 = vand.u32 %v219, 4294901760
      %232 = vmatpush1.msra.mxu0 %v231
      %233 = vmatprep.subr.mxu0 0.0
      %234 = vmatpush1.msra.mxu0 0.0
      %235 = vmatprep.subr.mxu0 0.0
      %236 = vmatpush1.msra.mxu0 0.0
      %237 = vmatprep.subr.mxu0 0.0
      %238 = vmatpush1.msra.mxu0 0.0
      %239 = vmatprep.subr.mxu0 0.0
      %240 = vmatpush1.msra.mxu0 0.0
      %241 = vmatprep.subr.mxu0 0.0
      %242 = vmatpush1.msra.mxu0 0.0
      %243 = vmatprep.subr.mxu0 0.0
      %244 = vmatpush1.msra.mxu0 0.0
      %245 = vmatprep.subr.mxu0 0.0
      %246 = vmatpush1.msra.mxu0 0.0
      %247 = vmatprep.subr.mxu0 0.0
      %248 = vmatpush1.msra.mxu0 0.0
      %249 = vmatprep.subr.mxu0 0.0
      %250 = vmatpush1.msra.mxu0 0.0
      %251 = vmatprep.subr.mxu0 0.0
      %252 = vmatpush1.msra.mxu0 0.0
      %253 = vmatprep.subr.mxu0 0.0
      %254 = vmatpush1.msra.mxu0 0.0
      %255 = vmatprep.subr.mxu0 0.0
      %256 = vmatpush1.msra.mxu0 0.0
      %257 = vmatprep.subr.mxu0 0.0
      %258 = vmatpush1.msra.mxu0 0.0
      %259 = vmatprep.subr.mxu0 0.0
      %260 = vmatpush1.msra.mxu0 0.0
      %261 = vmatprep.subr.mxu0 0.0
      %262 = vmatpush1.msra.mxu0 0.0
      %263 = vmatprep.subr.mxu0 0.0
      %264 = vmatpush1.msra.mxu0 0.0
      %265 = vmatprep.subr.mxu0 0.0
      %266 = vmatpush1.msra.mxu0 0.0
      %267 = vmatprep.subr.mxu0 0.0
      %268 = vmatpush1.msra.mxu0 0.0
      %269 = vmatprep.subr.mxu0 0.0
      %270 = vmatpush1.msra.mxu0 0.0
      %271 = vmatprep.subr.mxu0 0.0
      %272 = vmatpush1.msra.mxu0 0.0
      %273 = vmatprep.subr.mxu0 0.0
      %274 = vmatpush1.msra.mxu0 0.0
      %275 = vmatprep.subr.mxu0 0.0
      %276 = vmatpush1.msra.mxu0 0.0
      %277 = vmatprep.subr.mxu0 0.0
      %278 = vmatpush1.msra.mxu0 0.0
      %279 = vmatprep.subr.mxu0 0.0
      %280 = vmatpush1.msra.mxu0 0.0
      %281 = vmatprep.subr.mxu0 0.0
      %282 = vmatpush1.msra.mxu0 0.0
      %283 = vmatprep.subr.mxu0 0.0
      %284 = vmatpush1.msra.mxu0 0.0
      %285 = vmatprep.subr.mxu0 0.0
      %286 = vmatpush1.msra.mxu0 0.0
      %287 = vmatprep.subr.mxu0 0.0
      %288 = vmatpush1.msra.mxu0 0.0
      %289 = vmatprep.subr.mxu0 0.0
      %290 = vmatpush1.msra.mxu0 0.0
      %291 = vmatprep.subr.mxu0 0.0
      %292 = vmatpush1.msra.mxu0 0.0
      %293 = vmatprep.mubr.f32.mxu0 0.0
      %v294 = vand.u32 %v222, 4294901760
      %v295 = vsub.f32 %v222, %v294
      %v296 = vand.u32 %v295, 4294901760
      %v297 = vsub.f32 %v295, %v296
      %v298 = vand.u32 %v297, 4294901760
      %299 = vmatmul.mubr.f32.gmra.mrb[0].mxu0 %v298
      %v300 = vpop.f32.mrb[0].mxu0
      %v301 = vadd.f32 0.0, %v300
      %v302 = vpop.f32.mrb[0].mxu0
      %303 = vmatprep.mubr.f32.mxu0 0.0
      %v304 = vand.u32 %v225, 4294901760
      %v305 = vsub.f32 %v225, %v304
      %v306 = vand.u32 %v305, 4294901760
      %v307 = vsub.f32 %v305, %v306
      %v308 = vand.u32 %v307, 4294901760
      %309 = vmatmul.mubr.f32.gmra.mrb[0].mxu0 %v308
      %v310 = vpop.f32.mrb[0].mxu0
      %v311 = vadd.f32 0.0, %v310
      %v312 = vpop.f32.mrb[0].mxu0
      %313 = vdwg.mxu0
      %314 = vmatprep.subr.mxu0 0.0
      %v315 = vand.u32 %v218, 4294901760
      %v316 = vsub.f32 %v218, %v315
      %v317 = vand.u32 %v316, 4294901760
      %v318 = vsub.f32 %v316, %v317
      %v319 = vand.u32 %v318, 4294901760
      %320 = vmatpush1.msra.mxu0 %v319
      %321 = vmatprep.subr.mxu0 0.0
      %v322 = vand.u32 %v219, 4294901760
      %v323 = vsub.f32 %v219, %v322
      %v324 = vand.u32 %v323, 4294901760
      %v325 = vsub.f32 %v323, %v324
      %v326 = vand.u32 %v325, 4294901760
      %327 = vmatpush1.msra.mxu0 %v326
      %328 = vmatprep.subr.mxu0 0.0
      %329 = vmatpush1.msra.mxu0 0.0
      %330 = vmatprep.subr.mxu0 0.0
      %331 = vmatpush1.msra.mxu0 0.0
      %332 = vmatprep.subr.mxu0 0.0
      %333 = vmatpush1.msra.mxu0 0.0
      %334 = vmatprep.subr.mxu0 0.0
      %335 = vmatpush1.msra.mxu0 0.0
      %336 = vmatprep.subr.mxu0 0.0
      %337 = vmatpush1.msra.mxu0 0.0
      %338 = vmatprep.subr.mxu0 0.0
      %339 = vmatpush1.msra.mxu0 0.0
      %340 = vmatprep.subr.mxu0 0.0
      %341 = vmatpush1.msra.mxu0 0.0
      %342 = vmatprep.subr.mxu0 0.0
      %343 = vmatpush1.msra.mxu0 0.0
      %344 = vmatprep.subr.mxu0 0.0
      %345 = vmatpush1.msra.mxu0 0.0
      %346 = vmatprep.subr.mxu0 0.0
      %347 = vmatpush1.msra.mxu0 0.0
      %348 = vmatprep.subr.mxu0 0.0
      %349 = vmatpush1.msra.mxu0 0.0
      %350 = vmatprep.subr.mxu0 0.0
      %351 = vmatpush1.msra.mxu0 0.0
      %352 = vmatprep.subr.mxu0 0.0
      %353 = vmatpush1.msra.mxu0 0.0
      %354 = vmatprep.subr.mxu0 0.0
      %355 = vmatpush1.msra.mxu0 0.0
      %356 = vmatprep.subr.mxu0 0.0
      %357 = vmatpush1.msra.mxu0 0.0
      %358 = vmatprep.subr.mxu0 0.0
      %359 = vmatpush1.msra.mxu0 0.0
      %360 = vmatprep.subr.mxu0 0.0
      %361 = vmatpush1.msra.mxu0 0.0
      %362 = vmatprep.subr.mxu0 0.0
      %363 = vmatpush1.msra.mxu0 0.0
      %364 = vmatprep.subr.mxu0 0.0
      %365 = vmatpush1.msra.mxu0 0.0
      %366 = vmatprep.subr.mxu0 0.0
      %367 = vmatpush1.msra.mxu0 0.0
      %368 = vmatprep.subr.mxu0 0.0
      %369 = vmatpush1.msra.mxu0 0.0
      %370 = vmatprep.subr.mxu0 0.0
      %371 = vmatpush1.msra.mxu0 0.0
      %372 = vmatprep.subr.mxu0 0.0
      %373 = vmatpush1.msra.mxu0 0.0
      %374 = vmatprep.subr.mxu0 0.0
      %375 = vmatpush1.msra.mxu0 0.0
      %376 = vmatprep.subr.mxu0 0.0
      %377 = vmatpush1.msra.mxu0 0.0
      %378 = vmatprep.subr.mxu0 0.0
      %379 = vmatpush1.msra.mxu0 0.0
      %380 = vmatprep.subr.mxu0 0.0
      %381 = vmatpush1.msra.mxu0 0.0
      %382 = vmatprep.subr.mxu0 0.0
      %383 = vmatpush1.msra.mxu0 0.0
      %384 = vmatprep.subr.mxu0 0.0
      %385 = vmatpush1.msra.mxu0 0.0
      %386 = vmatprep.subr.mxu0 0.0
      %387 = vmatpush1.msra.mxu0 0.0
      %388 = vmatprep.mubr.f32.mxu0 0.0
      %v389 = vand.u32 %v222, 4294901760
      %390 = vmatmul.mubr.f32.gmra.mrb[0].mxu0 %v389
      %v391 = vpop.f32.mrb[0].mxu0
      %v392 = vadd.f32 %v301, %v391
      %v393 = vpop.f32.mrb[0].mxu0
      %394 = vmatprep.mubr.f32.mxu0 0.0
      %v395 = vand.u32 %v225, 4294901760
      %396 = vmatmul.mubr.f32.gmra.mrb[0].mxu0 %v395
      %v397 = vpop.f32.mrb[0].mxu0
      %v398 = vadd.f32 %v311, %v397
      %v399 = vpop.f32.mrb[0].mxu0
      %400 = vdwg.mxu0
      %401 = vmatprep.subr.mxu0 0.0
      %v402 = vand.u32 %v218, 4294901760
      %v403 = vsub.f32 %v218, %v402
      %404 = vmatpush1.msra.mxu0 %v403
      %405 = vmatprep.subr.mxu0 0.0
      %v406 = vand.u32 %v219, 4294901760
      %v407 = vsub.f32 %v219, %v406
      %408 = vmatpush1.msra.mxu0 %v407
      %409 = vmatprep.subr.mxu0 0.0
      %410 = vmatpush1.msra.mxu0 0.0
      %411 = vmatprep.subr.mxu0 0.0
      %412 = vmatpush1.msra.mxu0 0.0
      %413 = vmatprep.subr.mxu0 0.0
      %414 = vmatpush1.msra.mxu0 0.0
      %415 = vmatprep.subr.mxu0 0.0
      %416 = vmatpush1.msra.mxu0 0.0
      %417 = vmatprep.subr.mxu0 0.0
      %418 = vmatpush1.msra.mxu0 0.0
      %419 = vmatprep.subr.mxu0 0.0
      %420 = vmatpush1.msra.mxu0 0.0
      %421 = vmatprep.subr.mxu0 0.0
      %422 = vmatpush1.msra.mxu0 0.0
      %423 = vmatprep.subr.mxu0 0.0
      %424 = vmatpush1.msra.mxu0 0.0
      %425 = vmatprep.subr.mxu0 0.0
      %426 = vmatpush1.msra.mxu0 0.0
      %427 = vmatprep.subr.mxu0 0.0
      %428 = vmatpush1.msra.mxu0 0.0
      %429 = vmatprep.subr.mxu0 0.0
      %430 = vmatpush1.msra.mxu0 0.0
      %431 = vmatprep.subr.mxu0 0.0
      %432 = vmatpush1.msra.mxu0 0.0
      %433 = vmatprep.subr.mxu0 0.0
      %434 = vmatpush1.msra.mxu0 0.0
      %435 = vmatprep.subr.mxu0 0.0
      %436 = vmatpush1.msra.mxu0 0.0
      %437 = vmatprep.subr.mxu0 0.0
      %438 = vmatpush1.msra.mxu0 0.0
      %439 = vmatprep.subr.mxu0 0.0
      %440 = vmatpush1.msra.mxu0 0.0
      %441 = vmatprep.subr.mxu0 0.0
      %442 = vmatpush1.msra.mxu0 0.0
      %443 = vmatprep.subr.mxu0 0.0
      %444 = vmatpush1.msra.mxu0 0.0
      %445 = vmatprep.subr.mxu0 0.0
      %446 = vmatpush1.msra.mxu0 0.0
      %447 = vmatprep.subr.mxu0 0.0
      %448 = vmatpush1.msra.mxu0 0.0
      %449 = vmatprep.subr.mxu0 0.0
      %450 = vmatpush1.msra.mxu0 0.0
      %451 = vmatprep.subr.mxu0 0.0
      %452 = vmatpush1.msra.mxu0 0.0
      %453 = vmatprep.subr.mxu0 0.0
      %454 = vmatpush1.msra.mxu0 0.0
      %455 = vmatprep.subr.mxu0 0.0
      %456 = vmatpush1.msra.mxu0 0.0
      %457 = vmatprep.subr.mxu0 0.0
      %458 = vmatpush1.msra.mxu0 0.0
      %459 = vmatprep.subr.mxu0 0.0
      %460 = vmatpush1.msra.mxu0 0.0
      %461 = vmatprep.subr.mxu0 0.0
      %462 = vmatpush1.msra.mxu0 0.0
      %463 = vmatprep.subr.mxu0 0.0
      %464 = vmatpush1.msra.mxu0 0.0
      %465 = vmatprep.subr.mxu0 0.0
      %466 = vmatpush1.msra.mxu0 0.0
      %467 = vmatprep.subr.mxu0 0.0
      %468 = vmatpush1.msra.mxu0 0.0
      %469 = vmatprep.mubr.f32.mxu0 0.0
      %v470 = vand.u32 %v222, 4294901760
      %v471 = vsub.f32 %v222, %v470
      %472 = vmatmul.mubr.f32.gmra.mrb[0].mxu0 %v471
      %v473 = vpop.f32.mrb[0].mxu0
      %v474 = vadd.f32 %v392, %v473
      %v475 = vpop.f32.mrb[0].mxu0
      %476 = vmatprep.mubr.f32.mxu0 0.0
      %v477 = vand.u32 %v225, 4294901760
      %v478 = vsub.f32 %v225, %v477
      %479 = vmatmul.mubr.f32.gmra.mrb[0].mxu0 %v478
      %v480 = vpop.f32.mrb[0].mxu0
      %v481 = vadd.f32 %v398, %v480
      %v482 = vpop.f32.mrb[0].mxu0
      %483 = vdwg.mxu0
      %484 = vmatprep.subr.mxu0 0.0
      %v485 = vand.u32 %v218, 4294901760
      %486 = vmatpush1.msra.mxu0 %v485
      %487 = vmatprep.subr.mxu0 0.0
      %v488 = vand.u32 %v219, 4294901760
      %489 = vmatpush1.msra.mxu0 %v488
      %490 = vmatprep.subr.mxu0 0.0
      %491 = vmatpush1.msra.mxu0 0.0
      %492 = vmatprep.subr.mxu0 0.0
      %493 = vmatpush1.msra.mxu0 0.0
      %494 = vmatprep.subr.mxu0 0.0
      %495 = vmatpush1.msra.mxu0 0.0
      %496 = vmatprep.subr.mxu0 0.0
      %497 = vmatpush1.msra.mxu0 0.0
      %498 = vmatprep.subr.mxu0 0.0
      %499 = vmatpush1.msra.mxu0 0.0
      %500 = vmatprep.subr.mxu0 0.0
      %501 = vmatpush1.msra.mxu0 0.0
      %502 = vmatprep.subr.mxu0 0.0
      %503 = vmatpush1.msra.mxu0 0.0
      %504 = vmatprep.subr.mxu0 0.0
      %505 = vmatpush1.msra.mxu0 0.0
      %506 = vmatprep.subr.mxu0 0.0
      %507 = vmatpush1.msra.mxu0 0.0
      %508 = vmatprep.subr.mxu0 0.0
      %509 = vmatpush1.msra.mxu0 0.0
      %510 = vmatprep.subr.mxu0 0.0
      %511 = vmatpush1.msra.mxu0 0.0
      %512 = vmatprep.subr.mxu0 0.0
      %513 = vmatpush1.msra.mxu0 0.0
      %514 = vmatprep.subr.mxu0 0.0
      %515 = vmatpush1.msra.mxu0 0.0
      %516 = vmatprep.subr.mxu0 0.0
      %517 = vmatpush1.msra.mxu0 0.0
      %518 = vmatprep.subr.mxu0 0.0
      %519 = vmatpush1.msra.mxu0 0.0
      %520 = vmatprep.subr.mxu0 0.0
      %521 = vmatpush1.msra.mxu0 0.0
      %522 = vmatprep.subr.mxu0 0.0
      %523 = vmatpush1.msra.mxu0 0.0
      %524 = vmatprep.subr.mxu0 0.0
      %525 = vmatpush1.msra.mxu0 0.0
      %526 = vmatprep.subr.mxu0 0.0
      %527 = vmatpush1.msra.mxu0 0.0
      %528 = vmatprep.subr.mxu0 0.0
      %529 = vmatpush1.msra.mxu0 0.0
      %530 = vmatprep.subr.mxu0 0.0
      %531 = vmatpush1.msra.mxu0 0.0
      %532 = vmatprep.subr.mxu0 0.0
      %533 = vmatpush1.msra.mxu0 0.0
      %534 = vmatprep.subr.mxu0 0.0
      %535 = vmatpush1.msra.mxu0 0.0
      %536 = vmatprep.subr.mxu0 0.0
      %537 = vmatpush1.msra.mxu0 0.0
      %538 = vmatprep.subr.mxu0 0.0
      %539 = vmatpush1.msra.mxu0 0.0
      %540 = vmatprep.subr.mxu0 0.0
      %541 = vmatpush1.msra.mxu0 0.0
      %542 = vmatprep.subr.mxu0 0.0
      %543 = vmatpush1.msra.mxu0 0.0
      %544 = vmatprep.subr.mxu0 0.0
      %545 = vmatpush1.msra.mxu0 0.0
      %546 = vmatprep.subr.mxu0 0.0
      %547 = vmatpush1.msra.mxu0 0.0
      %548 = vmatprep.subr.mxu0 0.0
      %549 = vmatpush1.msra.mxu0 0.0
      %550 = vmatprep.mubr.f32.mxu0 0.0
      %v551 = vand.u32 %v222, 4294901760
      %v552 = vsub.f32 %v222, %v551
      %v553 = vand.u32 %v552, 4294901760
      %554 = vmatmul.mubr.f32.gmra.mrb[0].mxu0 %v553
      %v555 = vpop.f32.mrb[0].mxu0
      %v556 = vadd.f32 %v474, %v555
      %v557 = vpop.f32.mrb[0].mxu0
      %558 = vmatprep.mubr.f32.mxu0 0.0
      %v559 = vand.u32 %v225, 4294901760
      %v560 = vsub.f32 %v225, %v559
      %v561 = vand.u32 %v560, 4294901760
      %562 = vmatmul.mubr.f32.gmra.mrb[0].mxu0 %v561
      %v563 = vpop.f32.mrb[0].mxu0
      %v564 = vadd.f32 %v481, %v563
      %v565 = vpop.f32.mrb[0].mxu0
      %566 = vdwg.mxu0
      %567 = vmatprep.subr.mxu0 0.0
      %v568 = vand.u32 %v218, 4294901760
      %v569 = vsub.f32 %v218, %v568
      %v570 = vand.u32 %v569, 4294901760
      %571 = vmatpush1.msra.mxu0 %v570
      %572 = vmatprep.subr.mxu0 0.0
      %v573 = vand.u32 %v219, 4294901760
      %v574 = vsub.f32 %v219, %v573
      %v575 = vand.u32 %v574, 4294901760
      %576 = vmatpush1.msra.mxu0 %v575
      %577 = vmatprep.subr.mxu0 0.0
      %578 = vmatpush1.msra.mxu0 0.0
      %579 = vmatprep.subr.mxu0 0.0
      %580 = vmatpush1.msra.mxu0 0.0
      %581 = vmatprep.subr.mxu0 0.0
      %582 = vmatpush1.msra.mxu0 0.0
      %583 = vmatprep.subr.mxu0 0.0
      %584 = vmatpush1.msra.mxu0 0.0
      %585 = vmatprep.subr.mxu0 0.0
      %586 = vmatpush1.msra.mxu0 0.0
      %587 = vmatprep.subr.mxu0 0.0
      %588 = vmatpush1.msra.mxu0 0.0
      %589 = vmatprep.subr.mxu0 0.0
      %590 = vmatpush1.msra.mxu0 0.0
      %591 = vmatprep.subr.mxu0 0.0
      %592 = vmatpush1.msra.mxu0 0.0
      %593 = vmatprep.subr.mxu0 0.0
      %594 = vmatpush1.msra.mxu0 0.0
      %595 = vmatprep.subr.mxu0 0.0
      %596 = vmatpush1.msra.mxu0 0.0
      %597 = vmatprep.subr.mxu0 0.0
      %598 = vmatpush1.msra.mxu0 0.0
      %599 = vmatprep.subr.mxu0 0.0
      %600 = vmatpush1.msra.mxu0 0.0
      %601 = vmatprep.subr.mxu0 0.0
      %602 = vmatpush1.msra.mxu0 0.0
      %603 = vmatprep.subr.mxu0 0.0
      %604 = vmatpush1.msra.mxu0 0.0
      %605 = vmatprep.subr.mxu0 0.0
      %606 = vmatpush1.msra.mxu0 0.0
      %607 = vmatprep.subr.mxu0 0.0
      %608 = vmatpush1.msra.mxu0 0.0
      %609 = vmatprep.subr.mxu0 0.0
      %610 = vmatpush1.msra.mxu0 0.0
      %611 = vmatprep.subr.mxu0 0.0
      %612 = vmatpush1.msra.mxu0 0.0
      %613 = vmatprep.subr.mxu0 0.0
      %614 = vmatpush1.msra.mxu0 0.0
      %615 = vmatprep.subr.mxu0 0.0
      %616 = vmatpush1.msra.mxu0 0.0
      %617 = vmatprep.subr.mxu0 0.0
      %618 = vmatpush1.msra.mxu0 0.0
      %619 = vmatprep.subr.mxu0 0.0
      %620 = vmatpush1.msra.mxu0 0.0
      %621 = vmatprep.subr.mxu0 0.0
      %622 = vmatpush1.msra.mxu0 0.0
      %623 = vmatprep.subr.mxu0 0.0
      %624 = vmatpush1.msra.mxu0 0.0
      %625 = vmatprep.subr.mxu0 0.0
      %626 = vmatpush1.msra.mxu0 0.0
      %627 = vmatprep.subr.mxu0 0.0
      %628 = vmatpush1.msra.mxu0 0.0
      %629 = vmatprep.subr.mxu0 0.0
      %630 = vmatpush1.msra.mxu0 0.0
      %631 = vmatprep.subr.mxu0 0.0
      %632 = vmatpush1.msra.mxu0 0.0
      %633 = vmatprep.subr.mxu0 0.0
      %634 = vmatpush1.msra.mxu0 0.0
      %635 = vmatprep.subr.mxu0 0.0
      %636 = vmatpush1.msra.mxu0 0.0
      %637 = vmatprep.mubr.f32.mxu0 0.0
      %v638 = vand.u32 %v222, 4294901760
      %639 = vmatmul.mubr.f32.gmra.mrb[0].mxu0 %v638
      %v640 = vpop.f32.mrb[0].mxu0
      %v641 = vadd.f32 %v556, %v640
      %v642 = vpop.f32.mrb[0].mxu0
      %643 = vmatprep.mubr.f32.mxu0 0.0
      %v644 = vand.u32 %v225, 4294901760
      %645 = vmatmul.mubr.f32.gmra.mrb[0].mxu0 %v644
      %v646 = vpop.f32.mrb[0].mxu0
      %v647 = vadd.f32 %v564, %v646
      %v648 = vpop.f32.mrb[0].mxu0
      %649 = vdwg.mxu0
      %650 = vmatprep.subr.mxu0 0.0
      %v651 = vand.u32 %v218, 4294901760
      %652 = vmatpush1.msra.mxu0 %v651
      %653 = vmatprep.subr.mxu0 0.0
      %v654 = vand.u32 %v219, 4294901760
      %655 = vmatpush1.msra.mxu0 %v654
      %656 = vmatprep.subr.mxu0 0.0
      %657 = vmatpush1.msra.mxu0 0.0
      %658 = vmatprep.subr.mxu0 0.0
      %659 = vmatpush1.msra.mxu0 0.0
      %660 = vmatprep.subr.mxu0 0.0
      %661 = vmatpush1.msra.mxu0 0.0
      %662 = vmatprep.subr.mxu0 0.0
      %663 = vmatpush1.msra.mxu0 0.0
      %664 = vmatprep.subr.mxu0 0.0
      %665 = vmatpush1.msra.mxu0 0.0
      %666 = vmatprep.subr.mxu0 0.0
      %667 = vmatpush1.msra.mxu0 0.0
      %668 = vmatprep.subr.mxu0 0.0
      %669 = vmatpush1.msra.mxu0 0.0
      %670 = vmatprep.subr.mxu0 0.0
      %671 = vmatpush1.msra.mxu0 0.0
      %672 = vmatprep.subr.mxu0 0.0
      %673 = vmatpush1.msra.mxu0 0.0
      %674 = vmatprep.subr.mxu0 0.0
      %675 = vmatpush1.msra.mxu0 0.0
      %676 = vmatprep.subr.mxu0 0.0
      %677 = vmatpush1.msra.mxu0 0.0
      %678 = vmatprep.subr.mxu0 0.0
      %679 = vmatpush1.msra.mxu0 0.0
      %680 = vmatprep.subr.mxu0 0.0
      %681 = vmatpush1.msra.mxu0 0.0
      %682 = vmatprep.subr.mxu0 0.0
      %683 = vmatpush1.msra.mxu0 0.0
      %684 = vmatprep.subr.mxu0 0.0
      %685 = vmatpush1.msra.mxu0 0.0
      %686 = vmatprep.subr.mxu0 0.0
      %687 = vmatpush1.msra.mxu0 0.0
      %688 = vmatprep.subr.mxu0 0.0
      %689 = vmatpush1.msra.mxu0 0.0
      %690 = vmatprep.subr.mxu0 0.0
      %691 = vmatpush1.msra.mxu0 0.0
      %692 = vmatprep.subr.mxu0 0.0
      %693 = vmatpush1.msra.mxu0 0.0
      %694 = vmatprep.subr.mxu0 0.0
      %695 = vmatpush1.msra.mxu0 0.0
      %696 = vmatprep.subr.mxu0 0.0
      %697 = vmatpush1.msra.mxu0 0.0
      %698 = vmatprep.subr.mxu0 0.0
      %699 = vmatpush1.msra.mxu0 0.0
      %700 = vmatprep.subr.mxu0 0.0
      %701 = vmatpush1.msra.mxu0 0.0
      %702 = vmatprep.subr.mxu0 0.0
      %703 = vmatpush1.msra.mxu0 0.0
      %704 = vmatprep.subr.mxu0 0.0
      %705 = vmatpush1.msra.mxu0 0.0
      %706 = vmatprep.subr.mxu0 0.0
      %707 = vmatpush1.msra.mxu0 0.0
      %708 = vmatprep.subr.mxu0 0.0
      %709 = vmatpush1.msra.mxu0 0.0
      %710 = vmatprep.subr.mxu0 0.0
      %711 = vmatpush1.msra.mxu0 0.0
      %712 = vmatprep.subr.mxu0 0.0
      %713 = vmatpush1.msra.mxu0 0.0
      %714 = vmatprep.subr.mxu0 0.0
      %715 = vmatpush1.msra.mxu0 0.0
      %716 = vmatprep.mubr.f32.mxu0 0.0
      %v717 = vand.u32 %v222, 4294901760
      %718 = vmatmul.mubr.f32.gmra.mrb[0].mxu0 %v717
      %v719 = vpop.f32.mrb[0].mxu0
      %v720 = vadd.f32 %v641, %v719
      %v721 = vpop.f32.mrb[0].mxu0
      %722 = vmatprep.mubr.f32.mxu0 0.0
      %v723 = vand.u32 %v225, 4294901760
      %724 = vmatmul.mubr.f32.gmra.mrb[0].mxu0 %v723
      %v725 = vpop.f32.mrb[0].mxu0
      %v726 = vadd.f32 %v647, %v725
      %v727 = vpop.f32.mrb[0].mxu0
      %728 = vdwg.mxu0
      %729 = vst.msk [vmem:[%s148] sm:$0xff] %vm220, %v720
      %730 = vst.msk [vmem:[%s148 + $0x8] sm:$0xff] %vm220, %v726
      %s731 = smul.u32 2, %s13
      %p732 = scmp.lt.s32.totalorder %s731, 7
      %s733 = scalar_select %p732, %s731, 7
      %s734 = smul.addr %s733, 8
      %s735 = scalar_lea.vmem %s2, %s734
      // Predicated region
      $region29: #{tpu_custom_call.1} parent=27 // pred_check
        %p736 = pneg %p78
      $region30: #{tpu_custom_call.1} parent=27 // pred_check_branch
        %738 = sbr.rel (%p736) target = $region32
      $region31: #{tpu_custom_call.1} parent=27 // pred_region
        %s739 = smul.u32 2, %s13
      $region32: #{tpu_custom_call.1} parent=27 // pred_fallthru
        _
    $region28: #{tpu_custom_call.1} parent=5 // pred_fallthru
      _
    %p740 = scmp.le.s32.totalorder 2, %s8
    // Predicated region
    $region33: #{tpu_custom_call.1} parent=5 // pred_check
      %p741 = pneg %p740
    $region34: #{tpu_custom_call.1} parent=5 // pred_check_branch
      %743 = sbr.rel (%p741) target = $region36
    $region35: #{tpu_custom_call.1} parent=5 // pred_region
      %s744 = ssub.s32 %s8, 2
      // Predicated region
      $region37: #{tpu_custom_call.1} parent=35 // pred_check
        %p745 = pneg %p84
      $region38: #{tpu_custom_call.1} parent=35 // pred_check_branch
        %747 = sbr.rel (%p745) target = $region40
      $region39: #{tpu_custom_call.1} parent=35 // pred_region
        %s748 = smul.u32 2, %s14
        %p749 = scmp.lt.s32.totalorder %s748, 7
        %s750 = scalar_select %p749, %s748, 7
        %s751 = smul.addr %s750, 8
        %s752 = scalar_lea.vmem %s2, %s751
      $region40: #{tpu_custom_call.1} parent=35 // pred_fallthru
        _
    $region36: #{tpu_custom_call.1} parent=5 // pred_fallthru
      _
  $region6: #{tpu_custom_call.1} parent=0 // loop_footer
    %s12 = sadd.s32 1, %s8
  $region7: #{tpu_custom_call.1} parent=0 // loop_footer_branch
    %7 = sbr.rel target = $region3
  $region8: #{tpu_custom_call.1} parent=0 // loop_exit
    _

</llo_original>
